<compile_context>
chip_gen: v6e
topology: v6e:2x2x1
jax: 0.10.0
libtpu: 0.0.40
codegen_flags: <defaults>
</compile_context>

<pallas_src>
import jax
import jax.numpy as jnp
from jax.experimental import pallas as pl
from jax.experimental.pallas import tpu as pltpu


def _round_up(x, m):
    return ((x + m - 1) // m) * m


def decoder_kernel(z_ref,
                   w1_ref, b1_ref,
                   w2_ref, b2_ref,
                   w34_ref, b34_ref,
                   out_ref):
    z = z_ref[...]

    # fc1 + relu
    h = jnp.dot(z, w1_ref[...], preferred_element_type=jnp.float32) + b1_ref[...]
    h = jnp.maximum(h, 0.0)

    # fc2 + relu (+ dropout: identity in eval mode)
    h = jnp.dot(h, w2_ref[...], preferred_element_type=jnp.float32) + b2_ref[...]
    h = jnp.maximum(h, 0.0)

    # fused out + final_fcn (lane-dense, padded output width)
    out_ref[...] = (jnp.dot(h, w34_ref[...], preferred_element_type=jnp.float32)
                    + b34_ref[...])


def decoder_forward(z, params, *, tile_b=None):
    """z: (B, latent_dim) float32. params: dict of weights/biases (see init_params).

    Weights are stored as (in_features, out_features) — the transpose of PyTorch's
    nn.Linear weight — and biases as (1, out_features), so the kernel computes
    y = x @ W + b directly on the MXU.
    """
    B, latent_dim = z.shape
    w1, b1 = params["w1"], params["b1"]
    w2, b2 = params["w2"], params["b2"]
    w3, b3 = params["w3"], params["b3"]
    w4, b4 = params["w4"], params["b4"]

    h1 = w1.shape[1]            # 128
    h2 = w2.shape[1]            # 500
    fut = w4.shape[1]           # future_steps

    # --- Param prep (wrapper-side, all static shapes, all exact) ------------
    # Pad the 500-wide hidden to a multiple of 128 lanes.
    h2p = _round_up(h2, 128)                                  # 500 -> 512
    w2p = jnp.pad(w2, ((0, 0), (0, h2p - h2)))                # (128, 512)
    b2p = jnp.pad(b2, ((0, 0), (0, h2p - h2)))                # (1, 512)
    w3p = jnp.pad(w3, ((0, h2p - h2), (0, 0)))                # (512, fut)

    # Fuse `out` and `final_fcn` (no nonlinearity between them).
    w34 = w3p @ w4                                            # (512, fut)
    b34 = b3 @ w4 + b4                                        # (1, fut)

    # Lane-dense output: pad the output width to a multiple of 128.
    futp = _round_up(max(fut, 128), 128)                      # 16 -> 128
    w34p = jnp.pad(w34, ((0, 0), (0, futp - fut)))            # (512, futp)
    b34p = jnp.pad(b34, ((0, 0), (0, futp - fut)))            # (1, futp)

    # --- Batch tiling --------------------------------------------------------
    # Big tiles to amortize per-step pipeline overhead and fill the MXU, but
    # keep >=2 grid steps when possible so both v7x TensorCores get work.
    if tile_b is None:
        half = pl.cdiv(B, 2)
        tile_b = min(512, max(8, _round_up(half, 8)))
    tile_b = max(8, _round_up(tile_b, 8))

    Bp = _round_up(B, tile_b)
    z_p = jnp.pad(z, ((0, Bp - B), (0, 0))) if Bp != B else z
    grid = (Bp // tile_b,)

    # Weights/biases are grid-invariant (constant index_map) -> VMEM-resident.
    def rep(shape):
        return pl.BlockSpec(shape, lambda i, _n=len(shape): (0,) * _n)

    out_padded = pl.pallas_call(
        decoder_kernel,
        out_shape=jax.ShapeDtypeStruct((Bp, futp), jnp.float32),
        grid=grid,
        in_specs=[
            pl.BlockSpec((tile_b, latent_dim), lambda i: (i, 0)),   # z
            rep((latent_dim, h1)), rep((1, h1)),                    # fc1
            rep((h1, h2p)),        rep((1, h2p)),                   # fc2 (padded)
            rep((h2p, futp)),      rep((1, futp)),                  # fused out+final_fcn
        ],
        out_specs=pl.BlockSpec((tile_b, futp), lambda i: (i, 0)),
        compiler_params=pltpu.CompilerParams(
            dimension_semantics=("parallel",)),
    )(z_p, w1, b1, w2p, b2p, w34p, b34p)

    return out_padded[:B, :fut]


def init_params(key, latent_dim, future_steps):
    """Deterministic synthetic init (shapes follow the PyTorch module)."""
    ks = jax.random.split(key, 8)

    def linear(kw, kb, fan_in, fan_out):
        bound = 1.0 / jnp.sqrt(fan_in)
        w = jax.random.uniform(kw, (fan_in, fan_out), jnp.float32, -bound, bound)
        b = jax.random.uniform(kb, (1, fan_out), jnp.float32, -bound, bound)
        return w, b

    w1, b1 = linear(ks[0], ks[1], latent_dim, 128)
    w2, b2 = linear(ks[2], ks[3], 128, 500)
    w3, b3 = linear(ks[4], ks[5], 500, future_steps)
    w4, b4 = linear(ks[6], ks[7], future_steps, future_steps)
    return {"w1": w1, "b1": b1, "w2": w2, "b2": b2,
            "w3": w3, "b3": b3, "w4": w4, "b4": b4}


def decoder_ref(z, p):
    """Pure-JAX reference of the PyTorch forward (eval mode)."""
    h = jax.nn.relu(z @ p["w1"] + p["b1"])
    h = jax.nn.relu(h @ p["w2"] + p["b2"])
    o = h @ p["w3"] + p["b3"]
    return o @ p["w4"] + p["b4"]


if __name__ == "__main__":
    latent_dim = 32
    future_steps = 16
    batch = 16

    key = jax.random.PRNGKey(0)
    kz, kp = jax.random.split(key)
    z = jax.random.normal(kz, (batch, latent_dim), dtype=jnp.float32)
    params = init_params(kp, latent_dim, future_steps)

    out = decoder_forward(z, params)
    out = jax.block_until_ready(out)

    ref = decoder_ref(z, params)
    assert out.shape == (batch, future_steps)
    assert jnp.allclose(out, ref, atol=1e-4, rtol=1e-4), "mismatch vs reference"

    # Also exercise a ragged / larger batch path (pad + slice, 2+ grid steps).
    z_big = jax.random.normal(kz, (300, latent_dim), dtype=jnp.float32)
    out_big = jax.block_until_ready(decoder_forward(z_big, params))
    assert out_big.shape == (300, future_steps)
    assert jnp.allclose(out_big, decoder_ref(z_big, params), atol=1e-4, rtol=1e-4)

    print("KERNEL_OK")
</pallas_src>

<mosaic_0001>
module attributes {stable_mosaic.version = 11 : i64} {
  func.func @decoder_kernel(%arg0: i32, %arg1: memref<8x32xf32, #tpu.memory_space<vmem>>, %arg2: memref<32x128xf32, #tpu.memory_space<vmem>>, %arg3: memref<1x128xf32, #tpu.memory_space<vmem>>, %arg4: memref<128x512xf32, #tpu.memory_space<vmem>>, %arg5: memref<1x512xf32, #tpu.memory_space<vmem>>, %arg6: memref<512x128xf32, #tpu.memory_space<vmem>>, %arg7: memref<1x128xf32, #tpu.memory_space<vmem>>, %arg8: memref<8x128xf32, #tpu.memory_space<vmem>>) attributes {dimension_semantics = [#tpu.dimension_semantics<parallel>], iteration_bounds = array<i64: 2>, scalar_prefetch = 0 : i64, scratch_operands = 0 : i64, tpu.core_type = #tpu.core_type<tc>, window_params = [{transform_indices = @transform_0, window_bounds = array<i64: 8, 32>}, {pipeline_mode = #tpu.pipeline_mode<synchronous>, transform_indices = @transform_1, window_bounds = array<i64: 32, 128>}, {pipeline_mode = #tpu.pipeline_mode<synchronous>, transform_indices = @transform_2, window_bounds = array<i64: 1, 128>}, {pipeline_mode = #tpu.pipeline_mode<synchronous>, transform_indices = @transform_3, window_bounds = array<i64: 128, 512>}, {pipeline_mode = #tpu.pipeline_mode<synchronous>, transform_indices = @transform_4, window_bounds = array<i64: 1, 512>}, {pipeline_mode = #tpu.pipeline_mode<synchronous>, transform_indices = @transform_5, window_bounds = array<i64: 512, 128>}, {pipeline_mode = #tpu.pipeline_mode<synchronous>, transform_indices = @transform_6, window_bounds = array<i64: 1, 128>}, {transform_indices = @transform_7, window_bounds = array<i64: 8, 128>}]} {
    %c0 = arith.constant 0 : index
    %c0_0 = arith.constant 0 : index
    %0 = vector.load %arg1[%c0, %c0_0] : memref<8x32xf32, #tpu.memory_space<vmem>>, vector<8x32xf32>
    %c0_1 = arith.constant 0 : index
    %c0_2 = arith.constant 0 : index
    %1 = vector.load %arg2[%c0_1, %c0_2] : memref<32x128xf32, #tpu.memory_space<vmem>>, vector<32x128xf32>
    %cst = arith.constant dense<0.000000e+00> : vector<8x128xf32>
    %2 = tpu.matmul %0, %1, %cst {dimension_numbers = #tpu.dot_dimension_numbers<[1], [0], [0], [1], [0, 0, 1, 1], [], []>} : vector<8x32xf32>, vector<32x128xf32>, vector<8x128xf32> -> vector<8x128xf32>
    %c0_3 = arith.constant 0 : index
    %c0_4 = arith.constant 0 : index
    %3 = vector.load %arg3[%c0_3, %c0_4] : memref<1x128xf32, #tpu.memory_space<vmem>>, vector<1x128xf32>
    %4 = vector.broadcast %3 : vector<1x128xf32> to vector<8x128xf32>
    %5 = arith.addf %2, %4 : vector<8x128xf32>
    %cst_5 = arith.constant 0.000000e+00 : f32
    %6 = vector.broadcast %cst_5 : f32 to vector<8x128xf32>
    %7 = arith.maximumf %5, %6 : vector<8x128xf32>
    %c0_6 = arith.constant 0 : index
    %c0_7 = arith.constant 0 : index
    %8 = vector.load %arg4[%c0_6, %c0_7] : memref<128x512xf32, #tpu.memory_space<vmem>>, vector<128x512xf32>
    %cst_8 = arith.constant dense<0.000000e+00> : vector<8x512xf32>
    %9 = tpu.matmul %7, %8, %cst_8 {dimension_numbers = #tpu.dot_dimension_numbers<[1], [0], [0], [1], [0, 0, 1, 1], [], []>} : vector<8x128xf32>, vector<128x512xf32>, vector<8x512xf32> -> vector<8x512xf32>
    %c0_9 = arith.constant 0 : index
    %c0_10 = arith.constant 0 : index
    %10 = vector.load %arg5[%c0_9, %c0_10] : memref<1x512xf32, #tpu.memory_space<vmem>>, vector<1x512xf32>
    %11 = vector.broadcast %10 : vector<1x512xf32> to vector<8x512xf32>
    %12 = arith.addf %9, %11 : vector<8x512xf32>
    %cst_11 = arith.constant 0.000000e+00 : f32
    %13 = vector.broadcast %cst_11 : f32 to vector<8x512xf32>
    %14 = arith.maximumf %12, %13 : vector<8x512xf32>
    %c0_12 = arith.constant 0 : index
    %c0_13 = arith.constant 0 : index
    %15 = vector.load %arg6[%c0_12, %c0_13] : memref<512x128xf32, #tpu.memory_space<vmem>>, vector<512x128xf32>
    %cst_14 = arith.constant dense<0.000000e+00> : vector<8x128xf32>
    %16 = tpu.matmul %14, %15, %cst_14 {dimension_numbers = #tpu.dot_dimension_numbers<[1], [0], [0], [1], [0, 0, 1, 1], [], []>} : vector<8x512xf32>, vector<512x128xf32>, vector<8x128xf32> -> vector<8x128xf32>
    %c0_15 = arith.constant 0 : index
    %c0_16 = arith.constant 0 : index
    %17 = vector.load %arg7[%c0_15, %c0_16] : memref<1x128xf32, #tpu.memory_space<vmem>>, vector<1x128xf32>
    %18 = vector.broadcast %17 : vector<1x128xf32> to vector<8x128xf32>
    %19 = arith.addf %16, %18 : vector<8x128xf32>
    %c0_17 = arith.constant 0 : index
    %c0_18 = arith.constant 0 : index
    %20 = vector.load %arg8[%c0_17, %c0_18] : memref<8x128xf32, #tpu.memory_space<vmem>>, vector<8x128xf32>
    tpu.vector_store %arg8[%c0_17, %c0_18], %19 {strides = array<i32>} : memref<8x128xf32, #tpu.memory_space<vmem>>, vector<8x128xf32>,
    return
  }
  func.func @transform_0(%arg0: i32) -> (i32, i32) {
    %c0_i32 = arith.constant 0 : i32
    %c0_i32_0 = arith.constant 0 : i32
    return %arg0, %c0_i32 : i32, i32
  }
  func.func @transform_1(%arg0: i32) -> (i32, i32) {
    %c0_i32 = arith.constant 0 : i32
    %c0_i32_0 = arith.constant 0 : i32
    %c0_i32_1 = arith.constant 0 : i32
    return %c0_i32, %c0_i32_0 : i32, i32
  }
  func.func @transform_2(%arg0: i32) -> (i32, i32) {
    %c0_i32 = arith.constant 0 : i32
    %c0_i32_0 = arith.constant 0 : i32
    %c0_i32_1 = arith.constant 0 : i32
    return %c0_i32, %c0_i32_0 : i32, i32
  }
  func.func @transform_3(%arg0: i32) -> (i32, i32) {
    %c0_i32 = arith.constant 0 : i32
    %c0_i32_0 = arith.constant 0 : i32
    %c0_i32_1 = arith.constant 0 : i32
    return %c0_i32, %c0_i32_0 : i32, i32
  }
  func.func @transform_4(%arg0: i32) -> (i32, i32) {
    %c0_i32 = arith.constant 0 : i32
    %c0_i32_0 = arith.constant 0 : i32
    %c0_i32_1 = arith.constant 0 : i32
    return %c0_i32, %c0_i32_0 : i32, i32
  }
  func.func @transform_5(%arg0: i32) -> (i32, i32) {
    %c0_i32 = arith.constant 0 : i32
    %c0_i32_0 = arith.constant 0 : i32
    %c0_i32_1 = arith.constant 0 : i32
    return %c0_i32, %c0_i32_0 : i32, i32
  }
  func.func @transform_6(%arg0: i32) -> (i32, i32) {
    %c0_i32 = arith.constant 0 : i32
    %c0_i32_0 = arith.constant 0 : i32
    %c0_i32_1 = arith.constant 0 : i32
    return %c0_i32, %c0_i32_0 : i32, i32
  }
  func.func @transform_7(%arg0: i32) -> (i32, i32) {
    %c0_i32 = arith.constant 0 : i32
    %c0_i32_0 = arith.constant 0 : i32
    return %arg0, %c0_i32 : i32, i32
  }
}

</mosaic_0001>

<llo_original>
// kernel: tpu_custom_call.1
$region0: #{tpu_custom_call.1}
  #allocation0 [shape = 'u32[]', space=smem, size = 0x4, offset = 0x4, fixed_abs, tag = 'smem constant byte address 0x4 - core index']
  #allocation1 [shape = 'u32[144,128]{1,0:T(1,128)}', space=vmem, size = 0x12000, scoped, tag = 'internal scratch']
  %s0 = inlined_call_operand.hbm [shape: f32[16,32], index: 0, kind: input, shape index: {}]
  %s1 = inlined_call_operand.hbm [shape: f32[32,128], index: 1, kind: input, shape index: {}]
  %s2 = inlined_call_operand.vmem [shape: f32[1,128], index: 2, kind: input, shape index: {}]
  %s3 = inlined_call_operand.hbm [shape: f32[128,512], index: 3, kind: input, shape index: {}]
  %s4 = inlined_call_operand.vmem [shape: f32[1,512], index: 4, kind: input, shape index: {}]
  %s5 = inlined_call_operand.hbm [shape: f32[512,128], index: 5, kind: input, shape index: {}]
  %s6 = inlined_call_operand.vmem [shape: f32[1,128], index: 6, kind: input, shape index: {}]
  %s7 = inlined_call_operand.hbm [shape: f32[16,128], index: 7, kind: output, shape index: {}]
  %s8 = sld [smem:[#allocation0]]
  $region77: #{tpu_custom_call.1} parent=0
    _
  %s10 = ssub.s32 1, %s8
  %s11 = scalar_select 0, %s10, %s8
  $region1: #{tpu_custom_call.1} parent=0
    #allocation2 [shape = 'u8[8192]{0}', space=vmem, size = 0x2000, scoped, tag = 'input window, operand 0']
    #allocation3 [shape = 's32[2]{0}', space=sflag, size = 0x8, scoped, tag = 'scoped memory for tpu_custom_call.1']
    #allocation4 [shape = 's32[2]{0}', space=sflag, size = 0x8, scoped, tag = 'scoped memory for tpu_custom_call.1']
    #allocation5 [shape = 'u8[16384]{0}', space=vmem, size = 0x4000, scoped, tag = 'input window, operand 1, single buffered']
    #allocation6 [shape = 's32[1]{0}', space=sflag, size = 0x4, scoped, tag = 'scoped memory for tpu_custom_call.1']
    #allocation7 [shape = 'u8[262144]{0}', space=vmem, size = 0x40000, scoped, tag = 'input window, operand 3, single buffered']
    #allocation8 [shape = 'u8[262144]{0}', space=vmem, size = 0x40000, scoped, tag = 'input window, operand 5, single buffered']
    #allocation9 [shape = 's32[1]{0}', space=sflag, size = 0x4, scoped, tag = 'scoped memory for tpu_custom_call.1']
    #allocation10 [shape = 'u8[8192]{0}', space=vmem, size = 0x2000, scoped, tag = 'output window, operand 0']
    %12 = vsyncpa [#allocation3], 0
    %s13 = scalar_lea.sflag [#allocation3], 1
    %14 = vsyncpa %s13, 0
    %15 = vsyncpa [#allocation6], 0
    %16 = vsyncpa [#allocation9], 0
    %17 = vsyncpa [#allocation4], 0
    %s18 = scalar_lea.sflag [#allocation4], 1
    %19 = vsyncpa %s18, 0
    loop: start=0, step=1, limit=4
    $region2: #{tpu_custom_call.1} parent=1 // loop_pre_header
      _
    $region3: #{tpu_custom_call.1} parent=1 // loop_header
      %s21 = sphi 0, %s25
      %p22 = scmp.ge.s32.totalorder %s21, 4
      %s31 = sphi 0, %s33
      %s34 = sphi 0, %s31
      %s35 = sphi 0, %s34
      %s51 = sphi 0, %s35
      %s55 = sphi 0, %s55
      %s57 = sphi 0, %s55
      %s58 = sphi 0, %s57
      %s72 = sphi 0, %s58
      %s76 = sphi 0, %s76
      %s78 = sphi 0, %s76
      %s79 = sphi 0, %s78
      %s93 = sphi 0, %s79
      %s97 = sphi 0, %s97
      %s99 = sphi 0, %s97
      %s100 = sphi 0, %s99
      %s114 = sphi 0, %s100
      %s118 = sphi 0, %s118
      %s120 = sphi 0, %s118
      %s121 = sphi 0, %s120
      %s135 = sphi 0, %s121
      %s139 = sphi 0, %s139
      %s141 = sphi 0, %s139
      %s142 = sphi 0, %s141
      %s156 = sphi 0, %s142
      %s160 = sphi 0, %s160
      %s162 = sphi 0, %s160
      %s163 = sphi 0, %s162
      %s177 = sphi 0, %s163
      %s183 = sphi 0, %s185
      %s186 = sphi 0, %s183
      %s187 = sphi 0, %s186
      %s203 = sphi 0, %s187
    $region4: #{tpu_custom_call.1} parent=1 // loop_header_branch
      %24 = sbr.rel (%p22) target = $region8
    $region5: #{tpu_custom_call.1} parent=1 // loop_body
      %s26 = ssub.s32 %s21, 1
      %s27 = ssub.s32 %s21, 2
      %s28 = sadd.s32 %s21, 1
      %s29 = ssub.s32 %s21, %s28
      %p30 = scmp.eq.s32.totalorder %s29, 0
      %s32 = sadd.s32 %s31, 1
      %s33 = scalar_select %p30, %s31, %s32
      %p36 = pneg %p30
      %p37 = scmp.eq.s32.totalorder %s21, 1
      %p38 = por %p36, %p37
      %p39 = scmp.ne.s32.totalorder %s31, %s34
      %p40 = scmp.eq.s32.totalorder %s21, 0
      %p41 = por %p39, %p40
      %p42 = scmp.ne.s32.totalorder %s31, %s34
      %p43 = scmp.eq.s32.totalorder %s26, 1
      %p44 = por %p42, %p43
      %p45 = scmp.ne.s32.totalorder %s34, %s35
      %p46 = scmp.eq.s32.totalorder %s26, 0
      %p47 = por %p45, %p46
      %p48 = scmp.ne.s32.totalorder %s34, %s35
      %p49 = scmp.eq.s32.totalorder %s27, 1
      %p50 = por %p48, %p49
      %p52 = scmp.ne.s32.totalorder %s35, %s51
      %p53 = scmp.eq.s32.totalorder %s27, 0
      %p54 = por %p52, %p53
      %s56 = sadd.s32 %s55, 1
      %p59 = scmp.eq.s32.totalorder %s21, 1
      %p60 = scmp.ne.s32.totalorder %s55, %s57
      %p61 = scmp.eq.s32.totalorder %s21, 0
      %p62 = por %p60, %p61
      %p63 = scmp.ne.s32.totalorder %s55, %s57
      %p64 = scmp.eq.s32.totalorder %s26, 1
      %p65 = por %p63, %p64
      %p66 = scmp.ne.s32.totalorder %s57, %s58
      %p67 = scmp.eq.s32.totalorder %s26, 0
      %p68 = por %p66, %p67
      %p69 = scmp.ne.s32.totalorder %s57, %s58
      %p70 = scmp.eq.s32.totalorder %s27, 1
      %p71 = por %p69, %p70
      %p73 = scmp.ne.s32.totalorder %s58, %s72
      %p74 = scmp.eq.s32.totalorder %s27, 0
      %p75 = por %p73, %p74
      %s77 = sadd.s32 %s76, 1
      %p80 = scmp.eq.s32.totalorder %s21, 1
      %p81 = scmp.ne.s32.totalorder %s76, %s78
      %p82 = scmp.eq.s32.totalorder %s21, 0
      %p83 = por %p81, %p82
      %p84 = scmp.ne.s32.totalorder %s76, %s78
      %p85 = scmp.eq.s32.totalorder %s26, 1
      %p86 = por %p84, %p85
      %p87 = scmp.ne.s32.totalorder %s78, %s79
      %p88 = scmp.eq.s32.totalorder %s26, 0
      %p89 = por %p87, %p88
      %p90 = scmp.ne.s32.totalorder %s78, %s79
      %p91 = scmp.eq.s32.totalorder %s27, 1
      %p92 = por %p90, %p91
      %p94 = scmp.ne.s32.totalorder %s79, %s93
      %p95 = scmp.eq.s32.totalorder %s27, 0
      %p96 = por %p94, %p95
      %s98 = sadd.s32 %s97, 1
      %p101 = scmp.eq.s32.totalorder %s21, 1
      %p102 = scmp.ne.s32.totalorder %s97, %s99
      %p103 = scmp.eq.s32.totalorder %s21, 0
      %p104 = por %p102, %p103
      %p105 = scmp.ne.s32.totalorder %s97, %s99
      %p106 = scmp.eq.s32.totalorder %s26, 1
      %p107 = por %p105, %p106
      %p108 = scmp.ne.s32.totalorder %s99, %s100
      %p109 = scmp.eq.s32.totalorder %s26, 0
      %p110 = por %p108, %p109
      %p111 = scmp.ne.s32.totalorder %s99, %s100
      %p112 = scmp.eq.s32.totalorder %s27, 1
      %p113 = por %p111, %p112
      %p115 = scmp.ne.s32.totalorder %s100, %s114
      %p116 = scmp.eq.s32.totalorder %s27, 0
      %p117 = por %p115, %p116
      %s119 = sadd.s32 %s118, 1
      %p122 = scmp.eq.s32.totalorder %s21, 1
      %p123 = scmp.ne.s32.totalorder %s118, %s120
      %p124 = scmp.eq.s32.totalorder %s21, 0
      %p125 = por %p123, %p124
      %p126 = scmp.ne.s32.totalorder %s118, %s120
      %p127 = scmp.eq.s32.totalorder %s26, 1
      %p128 = por %p126, %p127
      %p129 = scmp.ne.s32.totalorder %s120, %s121
      %p130 = scmp.eq.s32.totalorder %s26, 0
      %p131 = por %p129, %p130
      %p132 = scmp.ne.s32.totalorder %s120, %s121
      %p133 = scmp.eq.s32.totalorder %s27, 1
      %p134 = por %p132, %p133
      %p136 = scmp.ne.s32.totalorder %s121, %s135
      %p137 = scmp.eq.s32.totalorder %s27, 0
      %p138 = por %p136, %p137
      %s140 = sadd.s32 %s139, 1
      %p143 = scmp.eq.s32.totalorder %s21, 1
      %p144 = scmp.ne.s32.totalorder %s139, %s141
      %p145 = scmp.eq.s32.totalorder %s21, 0
      %p146 = por %p144, %p145
      %p147 = scmp.ne.s32.totalorder %s139, %s141
      %p148 = scmp.eq.s32.totalorder %s26, 1
      %p149 = por %p147, %p148
      %p150 = scmp.ne.s32.totalorder %s141, %s142
      %p151 = scmp.eq.s32.totalorder %s26, 0
      %p152 = por %p150, %p151
      %p153 = scmp.ne.s32.totalorder %s141, %s142
      %p154 = scmp.eq.s32.totalorder %s27, 1
      %p155 = por %p153, %p154
      %p157 = scmp.ne.s32.totalorder %s142, %s156
      %p158 = scmp.eq.s32.totalorder %s27, 0
      %p159 = por %p157, %p158
      %s161 = sadd.s32 %s160, 1
      %p164 = scmp.eq.s32.totalorder %s21, 1
      %p165 = scmp.ne.s32.totalorder %s160, %s162
      %p166 = scmp.eq.s32.totalorder %s21, 0
      %p167 = por %p165, %p166
      %p168 = scmp.ne.s32.totalorder %s160, %s162
      %p169 = scmp.eq.s32.totalorder %s26, 1
      %p170 = por %p168, %p169
      %p171 = scmp.ne.s32.totalorder %s162, %s163
      %p172 = scmp.eq.s32.totalorder %s26, 0
      %p173 = por %p171, %p172
      %p174 = scmp.ne.s32.totalorder %s162, %s163
      %p175 = scmp.eq.s32.totalorder %s27, 1
      %p176 = por %p174, %p175
      %p178 = scmp.ne.s32.totalorder %s163, %s177
      %p179 = scmp.eq.s32.totalorder %s27, 0
      %p180 = por %p178, %p179
      %s181 = ssub.s32 %s21, %s28
      %p182 = scmp.eq.s32.totalorder %s181, 0
      %s184 = sadd.s32 %s183, 1
      %s185 = scalar_select %p182, %s183, %s184
      %p188 = pneg %p182
      %p189 = scmp.eq.s32.totalorder %s21, 1
      %p190 = por %p188, %p189
      %p191 = scmp.ne.s32.totalorder %s183, %s186
      %p192 = scmp.eq.s32.totalorder %s21, 0
      %p193 = por %p191, %p192
      %p194 = scmp.ne.s32.totalorder %s183, %s186
      %p195 = scmp.eq.s32.totalorder %s26, 1
      %p196 = por %p194, %p195
      %p197 = scmp.ne.s32.totalorder %s186, %s187
      %p198 = scmp.eq.s32.totalorder %s26, 0
      %p199 = por %p197, %p198
      %p200 = scmp.ne.s32.totalorder %s186, %s187
      %p201 = scmp.eq.s32.totalorder %s27, 1
      %p202 = por %p200, %p201
      %p204 = scmp.ne.s32.totalorder %s187, %s203
      %p205 = scmp.eq.s32.totalorder %s27, 0
      %p206 = por %p204, %p205
      %p207 = scmp.le.s32.totalorder 1, %s21
      %p208 = scmp.lt.s32.totalorder %s21, 3
      %p209 = pnand %p207, %p208
      %p210 = pneg %p209
      // Predicated region
      $region9: #{tpu_custom_call.1} parent=5 // pred_check
        _
      $region10: #{tpu_custom_call.1} parent=5 // pred_check_branch
        %212 = sbr.rel (%p209) target = $region12
      $region11: #{tpu_custom_call.1} parent=5 // pred_region
        %s213 = ssub.s32 %s21, 1
        // Predicated region
        $region13: #{tpu_custom_call.1} parent=11 // pred_check
          %p214 = pneg %p68
        $region14: #{tpu_custom_call.1} parent=11 // pred_check_branch
          %216 = sbr.rel (%p214) target = $region16
        $region15: #{tpu_custom_call.1} parent=11 // pred_region
          %s218 = ssub.s32 512, 512
          %219 = vsyncadd [#allocation6], %s218
          %s220 = sshll.u32 [#allocation5], 4
          %s221 = int_to_ptr.vmem [resolvable:$true] %s220
          %226 = dma.hbm_to_vmem [thread:$0]  %s1, 512, %s221, [#allocation6], 128, 128, 8
        $region16: #{tpu_custom_call.1} parent=11 // pred_fallthru
          _
        // Predicated region
        $region17: #{tpu_custom_call.1} parent=11 // pred_check
          %p227 = pneg %p89
        $region18: #{tpu_custom_call.1} parent=11 // pred_check_branch
          %229 = sbr.rel (%p227) target = $region20
        $region19: #{tpu_custom_call.1} parent=11 // pred_region
          _
        $region20: #{tpu_custom_call.1} parent=11 // pred_fallthru
          _
        // Predicated region
        $region21: #{tpu_custom_call.1} parent=11 // pred_check
          %p230 = pneg %p110
        $region22: #{tpu_custom_call.1} parent=11 // pred_check_branch
          %232 = sbr.rel (%p230) target = $region24
        $region23: #{tpu_custom_call.1} parent=11 // pred_region
          %s234 = ssub.s32 8192, 8192
          %235 = vsyncadd [#allocation6], %s234
          %s236 = sshll.u32 [#allocation7], 4
          %s237 = int_to_ptr.vmem [resolvable:$true] %s236
          %242 = dma.hbm_to_vmem [thread:$0]  %s3, 8192, %s237, [#allocation6], 512, 512, 32
        $region24: #{tpu_custom_call.1} parent=11 // pred_fallthru
          _
        // Predicated region
        $region25: #{tpu_custom_call.1} parent=11 // pred_check
          %p243 = pneg %p131
        $region26: #{tpu_custom_call.1} parent=11 // pred_check_branch
          %245 = sbr.rel (%p243) target = $region28
        $region27: #{tpu_custom_call.1} parent=11 // pred_region
          _
        $region28: #{tpu_custom_call.1} parent=11 // pred_fallthru
          _
        // Predicated region
        $region29: #{tpu_custom_call.1} parent=11 // pred_check
          %p246 = pneg %p152
        $region30: #{tpu_custom_call.1} parent=11 // pred_check_branch
          %248 = sbr.rel (%p246) target = $region32
        $region31: #{tpu_custom_call.1} parent=11 // pred_region
          %s250 = ssub.s32 8192, 8192
          %251 = vsyncadd [#allocation9], %s250
          %s252 = sshll.u32 [#allocation8], 4
          %s253 = int_to_ptr.vmem [resolvable:$true] %s252
          %258 = dma.hbm_to_vmem [thread:$0]  %s5, 8192, %s253, [#allocation9], 128, 128, 8
        $region32: #{tpu_custom_call.1} parent=11 // pred_fallthru
          _
        // Predicated region
        $region33: #{tpu_custom_call.1} parent=11 // pred_check
          %p259 = pneg %p173
        $region34: #{tpu_custom_call.1} parent=11 // pred_check_branch
          %261 = sbr.rel (%p259) target = $region36
        $region35: #{tpu_custom_call.1} parent=11 // pred_region
          _
        $region36: #{tpu_custom_call.1} parent=11 // pred_fallthru
          _
      $region12: #{tpu_custom_call.1} parent=5 // pred_fallthru
        _
      %p262 = scmp.lt.s32.totalorder %s21, 2
      // Predicated region
      $region37: #{tpu_custom_call.1} parent=5 // pred_check
        %p263 = pneg %p262
      $region38: #{tpu_custom_call.1} parent=5 // pred_check_branch
        %265 = sbr.rel (%p263) target = $region40
      $region39: #{tpu_custom_call.1} parent=5 // pred_region
        // Predicated region
        $region41: #{tpu_custom_call.1} parent=39 // pred_check
          %p266 = pneg %p41
        $region42: #{tpu_custom_call.1} parent=39 // pred_check_branch
          %268 = sbr.rel (%p266) target = $region44
        $region43: #{tpu_custom_call.1} parent=39 // pred_region
          %s269 = sand.u32 %s31, 1
          %s270 = scalar_lea.sflag [#allocation3], %s269
          %s271 = sand.u32 %s31, 1
          %s272 = smul.addr %s271, 8
          %s273 = scalar_lea.vmem [#allocation2], %s272
          %s275 = ssub.s32 128, 128
          %276 = vsyncadd %s270, %s275
          %s277 = smul.addr %s21, 128
          %s278 = scalar_lea.hbm %s0, %s277
          %s280 = sshll.u32 %s273, 4
          %s281 = int_to_ptr.vmem [resolvable:$true] %s280
          %283 = dma.hbm_to_vmem [thread:$0]  %s278, 128, %s281, %s270
        $region44: #{tpu_custom_call.1} parent=39 // pred_fallthru
          _
      $region40: #{tpu_custom_call.1} parent=5 // pred_fallthru
        _
      %p284 = scmp.le.s32.totalorder 1, %s21
      %p285 = scmp.lt.s32.totalorder %s21, 3
      %p286 = pnand %p284, %p285
      %p287 = pneg %p286
      // Predicated region
      $region45: #{tpu_custom_call.1} parent=5 // pred_check
        _
      $region46: #{tpu_custom_call.1} parent=5 // pred_check_branch
        %289 = sbr.rel (%p286) target = $region48
      $region47: #{tpu_custom_call.1} parent=5 // pred_region
        %s290 = ssub.s32 %s21, 1
        %s291 = sand.u32 %s34, 1
        %s292 = scalar_lea.sflag [#allocation3], %s291
        %s293 = sand.u32 %s34, 1
        %s294 = smul.addr %s293, 8
        %s295 = scalar_lea.vmem [#allocation2], %s294
        // Predicated region
        $region49: #{tpu_custom_call.1} parent=47 // pred_check
          %p296 = pneg %p47
        $region50: #{tpu_custom_call.1} parent=47 // pred_check_branch
          %298 = sbr.rel (%p296) target = $region52
        $region51: #{tpu_custom_call.1} parent=47 // pred_region
          %299 = dma.done %s292, 128
        $region52: #{tpu_custom_call.1} parent=47 // pred_fallthru
          _
        // Predicated region
        $region53: #{tpu_custom_call.1} parent=47 // pred_check
          %p300 = pneg %p68
        $region54: #{tpu_custom_call.1} parent=47 // pred_check_branch
          %302 = sbr.rel (%p300) target = $region56
        $region55: #{tpu_custom_call.1} parent=47 // pred_region
          %303 = dma.done [#allocation6], 512
        $region56: #{tpu_custom_call.1} parent=47 // pred_fallthru
          _
        // Predicated region
        $region57: #{tpu_custom_call.1} parent=47 // pred_check
          %p304 = pneg %p110
        $region58: #{tpu_custom_call.1} parent=47 // pred_check_branch
          %306 = sbr.rel (%p304) target = $region60
        $region59: #{tpu_custom_call.1} parent=47 // pred_region
          %307 = dma.done [#allocation6], 8192
        $region60: #{tpu_custom_call.1} parent=47 // pred_fallthru
          _
        // Predicated region
        $region61: #{tpu_custom_call.1} parent=47 // pred_check
          %p308 = pneg %p152
        $region62: #{tpu_custom_call.1} parent=47 // pred_check_branch
          %310 = sbr.rel (%p308) target = $region64
        $region63: #{tpu_custom_call.1} parent=47 // pred_region
          %311 = dma.done [#allocation9], 8192
        $region64: #{tpu_custom_call.1} parent=47 // pred_fallthru
          _
        %s312 = sand.u32 %s34, 1
        %s313 = scalar_lea.sflag [#allocation3], %s312
        %s314 = sand.u32 %s34, 1
        %s315 = smul.addr %s314, 8
        %s316 = scalar_lea.vmem [#allocation2], %s315
        %p317 = pneg %p47
        %p318 = pneg %p44
        %p319 = pneg %p68
        %p320 = pneg %p65
        %p321 = pneg %p89
        %p322 = pneg %p86
        %p323 = pneg %p110
        %p324 = pneg %p107
        %p325 = pneg %p131
        %p326 = pneg %p128
        %p327 = pneg %p152
        %p328 = pneg %p149
        %p329 = pneg %p173
        %p330 = pneg %p170
        %p331 = pneg %p199
        %p332 = pneg %p196
        %s333 = sand.u32 %s186, 1
        %s334 = scalar_lea.sflag [#allocation4], %s333
        %s335 = sand.u32 %s186, 1
        %s336 = smul.addr %s335, 8
        %s337 = scalar_lea.vmem [#allocation10], %s336
        %v338 = vld [vmem:[%s295] sm:$0xff]
        %v339 = vld [vmem:[#allocation5] sm:$0xff]
        %v340 = vld [vmem:[#allocation5 + $0x8] sm:$0xff]
        %v341 = vld [vmem:[#allocation5 + $0x10] sm:$0xff]
        %v342 = vld [vmem:[#allocation5 + $0x18] sm:$0xff]
        %v343 = vld [vmem:[%s2] sm:$0x1]
        %v345 = vlaneseq
        %v346 = vshrl.u32 %v345, 7
        %v347 = vsub.s32 0, %v346
        %v348 = vrot.slane %v343, %v347
        %vm350 = vcmask 261120
        %v352 = vsel %vm350, %v338, 0
        %354 = vmatprep.subr.mxu0 0.0
        %355 = vmatpush1.msra.mxu0 0.0
        %356 = vmatprep.subr.mxu0 0.0
        %357 = vmatpush1.msra.mxu0 0.0
        %358 = vmatprep.subr.mxu0 0.0
        %359 = vmatpush1.msra.mxu0 0.0
        %360 = vmatprep.subr.mxu0 0.0
        %361 = vmatpush1.msra.mxu0 0.0
        %362 = vmatprep.subr.mxu0 0.0
        %363 = vmatpush1.msra.mxu0 0.0
        %364 = vmatprep.subr.mxu0 0.0
        %365 = vmatpush1.msra.mxu0 0.0
        %366 = vmatprep.subr.mxu0 0.0
        %367 = vmatpush1.msra.mxu0 0.0
        %368 = vmatprep.subr.mxu0 0.0
        %369 = vmatpush1.msra.mxu0 0.0
        %370 = vmatprep.subr.mxu0 0.0
        %371 = vmatpush1.msra.mxu0 0.0
        %372 = vmatprep.subr.mxu0 0.0
        %373 = vmatpush1.msra.mxu0 0.0
        %374 = vmatprep.subr.mxu0 0.0
        %375 = vmatpush1.msra.mxu0 0.0
        %376 = vmatprep.subr.mxu0 0.0
        %377 = vmatpush1.msra.mxu0 0.0
        %378 = vmatprep.subr.mxu0 0.0
        %379 = vmatpush1.msra.mxu0 %v342
        %380 = vmatprep.subr.mxu0 0.0
        %381 = vmatpush1.msra.mxu0 %v341
        %382 = vmatprep.subr.mxu0 0.0
        %383 = vmatpush1.msra.mxu0 %v340
        %384 = vmatprep.subr.mxu0 0.0
        %385 = vmatpush1.msra.mxu0 %v339
        %386 = vmatprep.subr.mxu0 0.0
        %387 = vmatpush2.msra.mxu0 0.0
        %388 = vmatprep.subr.mxu0 0.0
        %389 = vmatpush2.msra.mxu0 0.0
        %390 = vmatprep.subr.mxu0 0.0
        %391 = vmatpush2.msra.mxu0 0.0
        %392 = vmatprep.subr.mxu0 0.0
        %393 = vmatpush2.msra.mxu0 0.0
        %394 = vmatprep.subr.mxu0 0.0
        %395 = vmatpush2.msra.mxu0 0.0
        %396 = vmatprep.subr.mxu0 0.0
        %397 = vmatpush2.msra.mxu0 0.0
        %398 = vmatprep.subr.mxu0 0.0
        %399 = vmatpush2.msra.mxu0 0.0
        %400 = vmatprep.subr.mxu0 0.0
        %401 = vmatpush2.msra.mxu0 0.0
        %402 = vmatprep.subr.mxu0 0.0
        %403 = vmatpush2.msra.mxu0 0.0
        %404 = vmatprep.subr.mxu0 0.0
        %405 = vmatpush2.msra.mxu0 0.0
        %406 = vmatprep.subr.mxu0 0.0
        %407 = vmatpush2.msra.mxu0 0.0
        %408 = vmatprep.subr.mxu0 0.0
        %409 = vmatpush2.msra.mxu0 0.0
        %410 = vmatprep.subr.mxu0 0.0
        %411 = vmatpush2.msra.mxu0 0.0
        %412 = vmatprep.subr.mxu0 0.0
        %413 = vmatpush2.msra.mxu0 0.0
        %414 = vmatprep.subr.mxu0 0.0
        %415 = vmatpush2.msra.mxu0 0.0
        %416 = vmatprep.subr.mxu0 0.0
        %417 = vmatpush2.msra.mxu0 0.0
        %418 = vmatprep.mubr.f32.mxu0 0.0
        %419 = vmatmul.mubr.f32.gmra.mxu0 %v352
        %v420 = vpop.f32.mrf.mxu0
        %v421 = vadd.f32 %v348, %v420
        %v422 = vpop.f32.mrf.mxu0
        %423 = vdwg.mxu0
        %v424 = vmax.f32 %v421, 0.0
        %v425 = vld [vmem:[#allocation7] sm:$0xff]
        %v426 = vld [vmem:[#allocation7 + $0x8] sm:$0xff]
        %v427 = vld [vmem:[#allocation7 + $0x10] sm:$0xff]
        %v428 = vld [vmem:[#allocation7 + $0x18] sm:$0xff]
        %v429 = vld [vmem:[#allocation7 + $0x20] sm:$0xff]
        %v430 = vld [vmem:[#allocation7 + $0x28] sm:$0xff]
        %v431 = vld [vmem:[#allocation7 + $0x30] sm:$0xff]
        %v432 = vld [vmem:[#allocation7 + $0x38] sm:$0xff]
        %v433 = vld [vmem:[#allocation7 + $0x40] sm:$0xff]
        %v434 = vld [vmem:[#allocation7 + $0x48] sm:$0xff]
        %v435 = vld [vmem:[#allocation7 + $0x50] sm:$0xff]
        %v436 = vld [vmem:[#allocation7 + $0x58] sm:$0xff]
        %v437 = vld [vmem:[#allocation7 + $0x60] sm:$0xff]
        %v438 = vld [vmem:[#allocation7 + $0x68] sm:$0xff]
        %v439 = vld [vmem:[#allocation7 + $0x70] sm:$0xff]
        %v440 = vld [vmem:[#allocation7 + $0x78] sm:$0xff]
        %v441 = vld [vmem:[#allocation7 + $0x80] sm:$0xff]
        %v442 = vld [vmem:[#allocation7 + $0x88] sm:$0xff]
        %v443 = vld [vmem:[#allocation7 + $0x90] sm:$0xff]
        %v444 = vld [vmem:[#allocation7 + $0x98] sm:$0xff]
        %v445 = vld [vmem:[#allocation7 + $0xa0] sm:$0xff]
        %v446 = vld [vmem:[#allocation7 + $0xa8] sm:$0xff]
        %v447 = vld [vmem:[#allocation7 + $0xb0] sm:$0xff]
        %v448 = vld [vmem:[#allocation7 + $0xb8] sm:$0xff]
        %v449 = vld [vmem:[#allocation7 + $0xc0] sm:$0xff]
        %v450 = vld [vmem:[#allocation7 + $0xc8] sm:$0xff]
        %v451 = vld [vmem:[#allocation7 + $0xd0] sm:$0xff]
        %v452 = vld [vmem:[#allocation7 + $0xd8] sm:$0xff]
        %v453 = vld [vmem:[#allocation7 + $0xe0] sm:$0xff]
        %v454 = vld [vmem:[#allocation7 + $0xe8] sm:$0xff]
        %v455 = vld [vmem:[#allocation7 + $0xf0] sm:$0xff]
        %v456 = vld [vmem:[#allocation7 + $0xf8] sm:$0xff]
        %v457 = vld [vmem:[#allocation7 + $0x100] sm:$0xff]
        %v458 = vld [vmem:[#allocation7 + $0x108] sm:$0xff]
        %v459 = vld [vmem:[#allocation7 + $0x110] sm:$0xff]
        %v460 = vld [vmem:[#allocation7 + $0x118] sm:$0xff]
        %v461 = vld [vmem:[#allocation7 + $0x120] sm:$0xff]
        %v462 = vld [vmem:[#allocation7 + $0x128] sm:$0xff]
        %v463 = vld [vmem:[#allocation7 + $0x130] sm:$0xff]
        %v464 = vld [vmem:[#allocation7 + $0x138] sm:$0xff]
        %v465 = vld [vmem:[#allocation7 + $0x140] sm:$0xff]
        %v466 = vld [vmem:[#allocation7 + $0x148] sm:$0xff]
        %v467 = vld [vmem:[#allocation7 + $0x150] sm:$0xff]
        %v468 = vld [vmem:[#allocation7 + $0x158] sm:$0xff]
        %v469 = vld [vmem:[#allocation7 + $0x160] sm:$0xff]
        %v470 = vld [vmem:[#allocation7 + $0x168] sm:$0xff]
        %v471 = vld [vmem:[#allocation7 + $0x170] sm:$0xff]
        %v472 = vld [vmem:[#allocation7 + $0x178] sm:$0xff]
        %v473 = vld [vmem:[#allocation7 + $0x180] sm:$0xff]
        %v474 = vld [vmem:[#allocation7 + $0x188] sm:$0xff]
        %v475 = vld [vmem:[#allocation7 + $0x190] sm:$0xff]
        %v476 = vld [vmem:[#allocation7 + $0x198] sm:$0xff]
        %v477 = vld [vmem:[#allocation7 + $0x1a0] sm:$0xff]
        %v478 = vld [vmem:[#allocation7 + $0x1a8] sm:$0xff]
        %v479 = vld [vmem:[#allocation7 + $0x1b0] sm:$0xff]
        %v480 = vld [vmem:[#allocation7 + $0x1b8] sm:$0xff]
        %v481 = vld [vmem:[#allocation7 + $0x1c0] sm:$0xff]
        %v482 = vld [vmem:[#allocation7 + $0x1c8] sm:$0xff]
        %v483 = vld [vmem:[#allocation7 + $0x1d0] sm:$0xff]
        %v484 = vld [vmem:[#allocation7 + $0x1d8] sm:$0xff]
        %v485 = vld [vmem:[#allocation7 + $0x1e0] sm:$0xff]
        %v486 = vld [vmem:[#allocation7 + $0x1e8] sm:$0xff]
        %v487 = vld [vmem:[#allocation7 + $0x1f0] sm:$0xff]
        %v488 = vld [vmem:[#allocation7 + $0x1f8] sm:$0xff]
        %v489 = vld [vmem:[%s4] sm:$0xf]
        %v491 = vlaneseq
        %v492 = vshrl.u32 %v491, 7
        %v493 = vsub.s32 0, %v492
        %v494 = vrot.slane %v489, %v493
        %v495 = vlaneseq
        %v496 = vshrl.u32 %v495, 7
        %v497 = vsub.s32 1, %v496
        %v498 = vrot.slane %v489, %v497
        %v499 = vlaneseq
        %v500 = vshrl.u32 %v499, 7
        %v501 = vsub.s32 2, %v500
        %v502 = vrot.slane %v489, %v501
        %v503 = vlaneseq
        %v504 = vshrl.u32 %v503, 7
        %v505 = vsub.s32 3, %v504
        %v506 = vrot.slane %v489, %v505
        %511 = vmatprep.subr.mxu0 %v486
        %512 = vmatpush1.msra.mxu0 %v485
        %513 = vmatprep.subr.mxu0 %v482
        %514 = vmatpush1.msra.mxu0 %v481
        %515 = vmatprep.subr.mxu0 %v478
        %516 = vmatpush1.msra.mxu0 %v477
        %517 = vmatprep.subr.mxu0 %v474
        %518 = vmatpush1.msra.mxu0 %v473
        %519 = vmatprep.subr.mxu0 %v470
        %520 = vmatpush1.msra.mxu0 %v469
        %521 = vmatprep.subr.mxu0 %v466
        %522 = vmatpush1.msra.mxu0 %v465
        %523 = vmatprep.subr.mxu0 %v462
        %524 = vmatpush1.msra.mxu0 %v461
        %525 = vmatprep.subr.mxu0 %v458
        %526 = vmatpush1.msra.mxu0 %v457
        %527 = vmatprep.subr.mxu0 %v454
        %528 = vmatpush1.msra.mxu0 %v453
        %529 = vmatprep.subr.mxu0 %v450
        %530 = vmatpush1.msra.mxu0 %v449
        %531 = vmatprep.subr.mxu0 %v446
        %532 = vmatpush1.msra.mxu0 %v445
        %533 = vmatprep.subr.mxu0 %v442
        %534 = vmatpush1.msra.mxu0 %v441
        %535 = vmatprep.subr.mxu0 %v438
        %536 = vmatpush1.msra.mxu0 %v437
        %537 = vmatprep.subr.mxu0 %v434
        %538 = vmatpush1.msra.mxu0 %v433
        %539 = vmatprep.subr.mxu0 %v430
        %540 = vmatpush1.msra.mxu0 %v429
        %541 = vmatprep.subr.mxu0 %v426
        %542 = vmatpush1.msra.mxu0 %v425
        %543 = vmatprep.subr.mxu0 0.0
        %544 = vmatpush2.msra.mxu0 0.0
        %545 = vmatprep.subr.mxu0 0.0
        %546 = vmatpush2.msra.mxu0 0.0
        %547 = vmatprep.subr.mxu0 0.0
        %548 = vmatpush2.msra.mxu0 0.0
        %549 = vmatprep.subr.mxu0 0.0
        %550 = vmatpush2.msra.mxu0 0.0
        %551 = vmatprep.subr.mxu0 0.0
        %552 = vmatpush2.msra.mxu0 0.0
        %553 = vmatprep.subr.mxu0 0.0
        %554 = vmatpush2.msra.mxu0 0.0
        %555 = vmatprep.subr.mxu0 0.0
        %556 = vmatpush2.msra.mxu0 0.0
        %557 = vmatprep.subr.mxu0 0.0
        %558 = vmatpush2.msra.mxu0 0.0
        %559 = vmatprep.subr.mxu0 0.0
        %560 = vmatpush2.msra.mxu0 0.0
        %561 = vmatprep.subr.mxu0 0.0
        %562 = vmatpush2.msra.mxu0 0.0
        %563 = vmatprep.subr.mxu0 0.0
        %564 = vmatpush2.msra.mxu0 0.0
        %565 = vmatprep.subr.mxu0 0.0
        %566 = vmatpush2.msra.mxu0 0.0
        %567 = vmatprep.subr.mxu0 0.0
        %568 = vmatpush2.msra.mxu0 0.0
        %569 = vmatprep.subr.mxu0 0.0
        %570 = vmatpush2.msra.mxu0 0.0
        %571 = vmatprep.subr.mxu0 0.0
        %572 = vmatpush2.msra.mxu0 0.0
        %573 = vmatprep.subr.mxu0 0.0
        %574 = vmatpush2.msra.mxu0 0.0
        %575 = vmatprep.mubr.f32.mxu0 0.0
        %576 = vmatmul.mubr.f32.gmra.mxu0 %v424
        %v577 = vpop.f32.mrf.mxu0
        %v578 = vadd.f32 %v494, %v577
        %v579 = vpop.f32.mrf.mxu0
        %v580 = vadd.f32 %v498, %v579
        %581 = vdwg.mxu0
        %582 = vmatprep.subr.mxu0 %v488
        %583 = vmatpush1.msra.mxu0 %v487
        %584 = vmatprep.subr.mxu0 %v484
        %585 = vmatpush1.msra.mxu0 %v483
        %586 = vmatprep.subr.mxu0 %v480
        %587 = vmatpush1.msra.mxu0 %v479
        %588 = vmatprep.subr.mxu0 %v476
        %589 = vmatpush1.msra.mxu0 %v475
        %590 = vmatprep.subr.mxu0 %v472
        %591 = vmatpush1.msra.mxu0 %v471
        %592 = vmatprep.subr.mxu0 %v468
        %593 = vmatpush1.msra.mxu0 %v467
        %594 = vmatprep.subr.mxu0 %v464
        %595 = vmatpush1.msra.mxu0 %v463
        %596 = vmatprep.subr.mxu0 %v460
        %597 = vmatpush1.msra.mxu0 %v459
        %598 = vmatprep.subr.mxu0 %v456
        %599 = vmatpush1.msra.mxu0 %v455
        %600 = vmatprep.subr.mxu0 %v452
        %601 = vmatpush1.msra.mxu0 %v451
        %602 = vmatprep.subr.mxu0 %v448
        %603 = vmatpush1.msra.mxu0 %v447
        %604 = vmatprep.subr.mxu0 %v444
        %605 = vmatpush1.msra.mxu0 %v443
        %606 = vmatprep.subr.mxu0 %v440
        %607 = vmatpush1.msra.mxu0 %v439
        %608 = vmatprep.subr.mxu0 %v436
        %609 = vmatpush1.msra.mxu0 %v435
        %610 = vmatprep.subr.mxu0 %v432
        %611 = vmatpush1.msra.mxu0 %v431
        %612 = vmatprep.subr.mxu0 %v428
        %613 = vmatpush1.msra.mxu0 %v427
        %614 = vmatprep.subr.mxu0 0.0
        %615 = vmatpush2.msra.mxu0 0.0
        %616 = vmatprep.subr.mxu0 0.0
        %617 = vmatpush2.msra.mxu0 0.0
        %618 = vmatprep.subr.mxu0 0.0
        %619 = vmatpush2.msra.mxu0 0.0
        %620 = vmatprep.subr.mxu0 0.0
        %621 = vmatpush2.msra.mxu0 0.0
        %622 = vmatprep.subr.mxu0 0.0
        %623 = vmatpush2.msra.mxu0 0.0
        %624 = vmatprep.subr.mxu0 0.0
        %625 = vmatpush2.msra.mxu0 0.0
        %626 = vmatprep.subr.mxu0 0.0
        %627 = vmatpush2.msra.mxu0 0.0
        %628 = vmatprep.subr.mxu0 0.0
        %629 = vmatpush2.msra.mxu0 0.0
        %630 = vmatprep.subr.mxu0 0.0
        %631 = vmatpush2.msra.mxu0 0.0
        %632 = vmatprep.subr.mxu0 0.0
        %633 = vmatpush2.msra.mxu0 0.0
        %634 = vmatprep.subr.mxu0 0.0
        %635 = vmatpush2.msra.mxu0 0.0
        %636 = vmatprep.subr.mxu0 0.0
        %637 = vmatpush2.msra.mxu0 0.0
        %638 = vmatprep.subr.mxu0 0.0
        %639 = vmatpush2.msra.mxu0 0.0
        %640 = vmatprep.subr.mxu0 0.0
        %641 = vmatpush2.msra.mxu0 0.0
        %642 = vmatprep.subr.mxu0 0.0
        %643 = vmatpush2.msra.mxu0 0.0
        %644 = vmatprep.subr.mxu0 0.0
        %645 = vmatpush2.msra.mxu0 0.0
        %646 = vmatprep.mubr.f32.mxu0 0.0
        %647 = vmatmul.mubr.f32.gmra.mxu0 %v424
        %v648 = vpop.f32.mrf.mxu0
        %v649 = vadd.f32 %v502, %v648
        %v650 = vpop.f32.mrf.mxu0
        %v651 = vadd.f32 %v506, %v650
        %652 = vdwg.mxu0
        %v653 = vmax.f32 %v578, 0.0
        %v654 = vmax.f32 %v580, 0.0
        %v655 = vmax.f32 %v649, 0.0
        %v656 = vmax.f32 %v651, 0.0
        %v657 = vld [vmem:[#allocation8] sm:$0xff]
        %v658 = vld [vmem:[#allocation8 + $0x8] sm:$0xff]
        %v659 = vld [vmem:[#allocation8 + $0x10] sm:$0xff]
        %v660 = vld [vmem:[#allocation8 + $0x18] sm:$0xff]
        %v661 = vld [vmem:[#allocation8 + $0x20] sm:$0xff]
        %v662 = vld [vmem:[#allocation8 + $0x28] sm:$0xff]
        %v663 = vld [vmem:[#allocation8 + $0x30] sm:$0xff]
        %v664 = vld [vmem:[#allocation8 + $0x38] sm:$0xff]
        %v665 = vld [vmem:[#allocation8 + $0x40] sm:$0xff]
        %v666 = vld [vmem:[#allocation8 + $0x48] sm:$0xff]
        %v667 = vld [vmem:[#allocation8 + $0x50] sm:$0xff]
        %v668 = vld [vmem:[#allocation8 + $0x58] sm:$0xff]
        %v669 = vld [vmem:[#allocation8 + $0x60] sm:$0xff]
        %v670 = vld [vmem:[#allocation8 + $0x68] sm:$0xff]
        %v671 = vld [vmem:[#allocation8 + $0x70] sm:$0xff]
        %v672 = vld [vmem:[#allocation8 + $0x78] sm:$0xff]
        %v673 = vld [vmem:[#allocation8 + $0x80] sm:$0xff]
        %v674 = vld [vmem:[#allocation8 + $0x88] sm:$0xff]
        %v675 = vld [vmem:[#allocation8 + $0x90] sm:$0xff]
        %v676 = vld [vmem:[#allocation8 + $0x98] sm:$0xff]
        %v677 = vld [vmem:[#allocation8 + $0xa0] sm:$0xff]
        %v678 = vld [vmem:[#allocation8 + $0xa8] sm:$0xff]
        %v679 = vld [vmem:[#allocation8 + $0xb0] sm:$0xff]
        %v680 = vld [vmem:[#allocation8 + $0xb8] sm:$0xff]
        %v681 = vld [vmem:[#allocation8 + $0xc0] sm:$0xff]
        %v682 = vld [vmem:[#allocation8 + $0xc8] sm:$0xff]
        %v683 = vld [vmem:[#allocation8 + $0xd0] sm:$0xff]
        %v684 = vld [vmem:[#allocation8 + $0xd8] sm:$0xff]
        %v685 = vld [vmem:[#allocation8 + $0xe0] sm:$0xff]
        %v686 = vld [vmem:[#allocation8 + $0xe8] sm:$0xff]
        %v687 = vld [vmem:[#allocation8 + $0xf0] sm:$0xff]
        %v688 = vld [vmem:[#allocation8 + $0xf8] sm:$0xff]
        %v689 = vld [vmem:[#allocation8 + $0x100] sm:$0xff]
        %v690 = vld [vmem:[#allocation8 + $0x108] sm:$0xff]
        %v691 = vld [vmem:[#allocation8 + $0x110] sm:$0xff]
        %v692 = vld [vmem:[#allocation8 + $0x118] sm:$0xff]
        %v693 = vld [vmem:[#allocation8 + $0x120] sm:$0xff]
        %v694 = vld [vmem:[#allocation8 + $0x128] sm:$0xff]
        %v695 = vld [vmem:[#allocation8 + $0x130] sm:$0xff]
        %v696 = vld [vmem:[#allocation8 + $0x138] sm:$0xff]
        %v697 = vld [vmem:[#allocation8 + $0x140] sm:$0xff]
        %v698 = vld [vmem:[#allocation8 + $0x148] sm:$0xff]
        %v699 = vld [vmem:[#allocation8 + $0x150] sm:$0xff]
        %v700 = vld [vmem:[#allocation8 + $0x158] sm:$0xff]
        %v701 = vld [vmem:[#allocation8 + $0x160] sm:$0xff]
        %v702 = vld [vmem:[#allocation8 + $0x168] sm:$0xff]
        %v703 = vld [vmem:[#allocation8 + $0x170] sm:$0xff]
        %v704 = vld [vmem:[#allocation8 + $0x178] sm:$0xff]
        %v705 = vld [vmem:[#allocation8 + $0x180] sm:$0xff]
        %v706 = vld [vmem:[#allocation8 + $0x188] sm:$0xff]
        %v707 = vld [vmem:[#allocation8 + $0x190] sm:$0xff]
        %v708 = vld [vmem:[#allocation8 + $0x198] sm:$0xff]
        %v709 = vld [vmem:[#allocation8 + $0x1a0] sm:$0xff]
        %v710 = vld [vmem:[#allocation8 + $0x1a8] sm:$0xff]
        %v711 = vld [vmem:[#allocation8 + $0x1b0] sm:$0xff]
        %v712 = vld [vmem:[#allocation8 + $0x1b8] sm:$0xff]
        %v713 = vld [vmem:[#allocation8 + $0x1c0] sm:$0xff]
        %v714 = vld [vmem:[#allocation8 + $0x1c8] sm:$0xff]
        %v715 = vld [vmem:[#allocation8 + $0x1d0] sm:$0xff]
        %v716 = vld [vmem:[#allocation8 + $0x1d8] sm:$0xff]
        %v717 = vld [vmem:[#allocation8 + $0x1e0] sm:$0xff]
        %v718 = vld [vmem:[#allocation8 + $0x1e8] sm:$0xff]
        %v719 = vld [vmem:[#allocation8 + $0x1f0] sm:$0xff]
        %v720 = vld [vmem:[#allocation8 + $0x1f8] sm:$0xff]
        %v721 = vld [vmem:[%s6] sm:$0x1]
        %v723 = vlaneseq
        %v724 = vshrl.u32 %v723, 7
        %v725 = vsub.s32 0, %v724
        %v726 = vrot.slane %v721, %v725
        %728 = vmatprep.subr.mxu0 0.0
        %729 = vmatpush1.msra.mxu0 %v672
        %730 = vmatprep.subr.mxu0 0.0
        %731 = vmatpush1.msra.mxu0 %v671
        %732 = vmatprep.subr.mxu0 0.0
        %733 = vmatpush1.msra.mxu0 %v670
        %734 = vmatprep.subr.mxu0 0.0
        %735 = vmatpush1.msra.mxu0 %v669
        %736 = vmatprep.subr.mxu0 0.0
        %737 = vmatpush1.msra.mxu0 %v668
        %738 = vmatprep.subr.mxu0 0.0
        %739 = vmatpush1.msra.mxu0 %v667
        %740 = vmatprep.subr.mxu0 0.0
        %741 = vmatpush1.msra.mxu0 %v666
        %742 = vmatprep.subr.mxu0 0.0
        %743 = vmatpush1.msra.mxu0 %v665
        %744 = vmatprep.subr.mxu0 0.0
        %745 = vmatpush1.msra.mxu0 %v664
        %746 = vmatprep.subr.mxu0 0.0
        %747 = vmatpush1.msra.mxu0 %v663
        %748 = vmatprep.subr.mxu0 0.0
        %749 = vmatpush1.msra.mxu0 %v662
        %750 = vmatprep.subr.mxu0 0.0
        %751 = vmatpush1.msra.mxu0 %v661
        %752 = vmatprep.subr.mxu0 0.0
        %753 = vmatpush1.msra.mxu0 %v660
        %754 = vmatprep.subr.mxu0 0.0
        %755 = vmatpush1.msra.mxu0 %v659
        %756 = vmatprep.subr.mxu0 0.0
        %757 = vmatpush1.msra.mxu0 %v658
        %758 = vmatprep.subr.mxu0 0.0
        %759 = vmatpush1.msra.mxu0 %v657
        %760 = vmatprep.subr.mxu0 0.0
        %761 = vmatpush2.msra.mxu0 %v688
        %762 = vmatprep.subr.mxu0 0.0
        %763 = vmatpush2.msra.mxu0 %v687
        %764 = vmatprep.subr.mxu0 0.0
        %765 = vmatpush2.msra.mxu0 %v686
        %766 = vmatprep.subr.mxu0 0.0
        %767 = vmatpush2.msra.mxu0 %v685
        %768 = vmatprep.subr.mxu0 0.0
        %769 = vmatpush2.msra.mxu0 %v684
        %770 = vmatprep.subr.mxu0 0.0
        %771 = vmatpush2.msra.mxu0 %v683
        %772 = vmatprep.subr.mxu0 0.0
        %773 = vmatpush2.msra.mxu0 %v682
        %774 = vmatprep.subr.mxu0 0.0
        %775 = vmatpush2.msra.mxu0 %v681
        %776 = vmatprep.subr.mxu0 0.0
        %777 = vmatpush2.msra.mxu0 %v680
        %778 = vmatprep.subr.mxu0 0.0
        %779 = vmatpush2.msra.mxu0 %v679
        %780 = vmatprep.subr.mxu0 0.0
        %781 = vmatpush2.msra.mxu0 %v678
        %782 = vmatprep.subr.mxu0 0.0
        %783 = vmatpush2.msra.mxu0 %v677
        %784 = vmatprep.subr.mxu0 0.0
        %785 = vmatpush2.msra.mxu0 %v676
        %786 = vmatprep.subr.mxu0 0.0
        %787 = vmatpush2.msra.mxu0 %v675
        %788 = vmatprep.subr.mxu0 0.0
        %789 = vmatpush2.msra.mxu0 %v674
        %790 = vmatprep.subr.mxu0 0.0
        %791 = vmatpush2.msra.mxu0 %v673
        %792 = vmatprep.mubr.f32.mxu0 %v654
        %793 = vmatmul.mubr.f32.gmra.mxu0 %v653
        %v794 = vpop.f32.mrf.mxu0
        %v795 = vadd.f32 %v726, %v794
        %v796 = vpop.f32.mrf.mxu0
        %797 = vdwg.mxu0
        %798 = vmatprep.subr.mxu0 0.0
        %799 = vmatpush1.msra.mxu0 %v704
        %800 = vmatprep.subr.mxu0 0.0
        %801 = vmatpush1.msra.mxu0 %v703
        %802 = vmatprep.subr.mxu0 0.0
        %803 = vmatpush1.msra.mxu0 %v702
        %804 = vmatprep.subr.mxu0 0.0
        %805 = vmatpush1.msra.mxu0 %v701
        %806 = vmatprep.subr.mxu0 0.0
        %807 = vmatpush1.msra.mxu0 %v700
        %808 = vmatprep.subr.mxu0 0.0
        %809 = vmatpush1.msra.mxu0 %v699
        %810 = vmatprep.subr.mxu0 0.0
        %811 = vmatpush1.msra.mxu0 %v698
        %812 = vmatprep.subr.mxu0 0.0
        %813 = vmatpush1.msra.mxu0 %v697
        %814 = vmatprep.subr.mxu0 0.0
        %815 = vmatpush1.msra.mxu0 %v696
        %816 = vmatprep.subr.mxu0 0.0
        %817 = vmatpush1.msra.mxu0 %v695
        %818 = vmatprep.subr.mxu0 0.0
        %819 = vmatpush1.msra.mxu0 %v694
        %820 = vmatprep.subr.mxu0 0.0
        %821 = vmatpush1.msra.mxu0 %v693
        %822 = vmatprep.subr.mxu0 0.0
        %823 = vmatpush1.msra.mxu0 %v692
        %824 = vmatprep.subr.mxu0 0.0
        %825 = vmatpush1.msra.mxu0 %v691
        %826 = vmatprep.subr.mxu0 0.0
        %827 = vmatpush1.msra.mxu0 %v690
        %828 = vmatprep.subr.mxu0 0.0
        %829 = vmatpush1.msra.mxu0 %v689
        %830 = vmatprep.subr.mxu0 0.0
        %831 = vmatpush2.msra.mxu0 %v720
        %832 = vmatprep.subr.mxu0 0.0
        %833 = vmatpush2.msra.mxu0 %v719
        %834 = vmatprep.subr.mxu0 0.0
        %835 = vmatpush2.msra.mxu0 %v718
        %836 = vmatprep.subr.mxu0 0.0
        %837 = vmatpush2.msra.mxu0 %v717
        %838 = vmatprep.subr.mxu0 0.0
        %839 = vmatpush2.msra.mxu0 %v716
        %840 = vmatprep.subr.mxu0 0.0
        %841 = vmatpush2.msra.mxu0 %v715
        %842 = vmatprep.subr.mxu0 0.0
        %843 = vmatpush2.msra.mxu0 %v714
        %844 = vmatprep.subr.mxu0 0.0
        %845 = vmatpush2.msra.mxu0 %v713
        %846 = vmatprep.subr.mxu0 0.0
        %847 = vmatpush2.msra.mxu0 %v712
        %848 = vmatprep.subr.mxu0 0.0
        %849 = vmatpush2.msra.mxu0 %v711
        %850 = vmatprep.subr.mxu0 0.0
        %851 = vmatpush2.msra.mxu0 %v710
        %852 = vmatprep.subr.mxu0 0.0
        %853 = vmatpush2.msra.mxu0 %v709
        %854 = vmatprep.subr.mxu0 0.0
        %855 = vmatpush2.msra.mxu0 %v708
        %856 = vmatprep.subr.mxu0 0.0
        %857 = vmatpush2.msra.mxu0 %v707
        %858 = vmatprep.subr.mxu0 0.0
        %859 = vmatpush2.msra.mxu0 %v706
        %860 = vmatprep.subr.mxu0 0.0
        %861 = vmatpush2.msra.mxu0 %v705
        %862 = vmatprep.mubr.f32.mxu0 %v656
        %863 = vmatmul.mubr.f32.gmra.mxu0 %v655
        %v864 = vpop.f32.mrf.mxu0
        %v865 = vadd.f32 %v795, %v864
        %v866 = vpop.f32.mrf.mxu0
        %867 = vdwg.mxu0
        %868 = vst [vmem:[%s337] sm:$0xff] %v865
        %s869 = sand.u32 %s186, 1
        %s870 = scalar_lea.sflag [#allocation4], %s869
        %s871 = sand.u32 %s186, 1
        %s872 = smul.addr %s871, 8
        %s873 = scalar_lea.vmem [#allocation10], %s872
        // Predicated region
        $region65: #{tpu_custom_call.1} parent=47 // pred_check
          %p874 = pneg %p196
        $region66: #{tpu_custom_call.1} parent=47 // pred_check_branch
          %876 = sbr.rel (%p874) target = $region68
        $region67: #{tpu_custom_call.1} parent=47 // pred_region
          %s878 = ssub.s32 128, 128
          %879 = vsyncadd %s870, %s878
          %s880 = smul.addr %s26, 128
          %s881 = scalar_lea.hbm %s7, %s880
          %s883 = sshll.u32 %s873, 4
          %s884 = int_to_ptr.vmem [resolvable:$true] %s883
          %886 = dma.vmem_to_hbm [thread:$0]  %s884, 128, %s881, %s870
        $region68: #{tpu_custom_call.1} parent=47 // pred_fallthru
          _
      $region48: #{tpu_custom_call.1} parent=5 // pred_fallthru
        _
      %p887 = scmp.le.s32.totalorder 2, %s21
      // Predicated region
      $region69: #{tpu_custom_call.1} parent=5 // pred_check
        %p888 = pneg %p887
      $region70: #{tpu_custom_call.1} parent=5 // pred_check_branch
        %890 = sbr.rel (%p888) target = $region72
      $region71: #{tpu_custom_call.1} parent=5 // pred_region
        %s891 = ssub.s32 %s21, 2
        // Predicated region
        $region73: #{tpu_custom_call.1} parent=71 // pred_check
          %p892 = pneg %p202
        $region74: #{tpu_custom_call.1} parent=71 // pred_check_branch
          %894 = sbr.rel (%p892) target = $region76
        $region75: #{tpu_custom_call.1} parent=71 // pred_region
          %s895 = sand.u32 %s187, 1
          %s896 = scalar_lea.sflag [#allocation4], %s895
          %s897 = sand.u32 %s187, 1
          %s898 = smul.addr %s897, 8
          %s899 = scalar_lea.vmem [#allocation10], %s898
          %900 = dma.done %s896, 128
        $region76: #{tpu_custom_call.1} parent=71 // pred_fallthru
          _
      $region72: #{tpu_custom_call.1} parent=5 // pred_fallthru
        _
    $region6: #{tpu_custom_call.1} parent=1 // loop_footer
      %s25 = sadd.s32 1, %s21
    $region7: #{tpu_custom_call.1} parent=1 // loop_footer_branch
      %20 = sbr.rel target = $region3
    $region8: #{tpu_custom_call.1} parent=1 // loop_exit
      _
    %901 = vsyncpa [#allocation3], 1
    %s902 = scalar_lea.sflag [#allocation3], 1
    %903 = vsyncpa %s902, 1
    %904 = vsyncpa [#allocation6], 1
    %905 = vsyncpa [#allocation9], 1
    %906 = vsyncpa [#allocation4], 1
    %s907 = scalar_lea.sflag [#allocation4], 1
    %908 = vsyncpa %s907, 1

</llo_original>
